<compile_context>
chip_gen: v6e
topology: v6e:2x2x1
jax: 0.10.0
libtpu: 0.0.40
codegen_flags: <defaults>
</compile_context>

<pallas_src>
import math
import functools

import jax
import jax.numpy as jnp
from jax.experimental import pallas as pl
from jax.experimental.pallas import tpu as pltpu

# ---- module constants (from the PyTorch source / tutorial) ----
d_k = 64
d_v = 64
n_heads = 8

_SCALE = 1.0 / math.sqrt(d_k)   # 0.125 = 2^-3 -> exactly representable in bf16, so folding
                                # it into the (TQ, d_k) Q tile is lossless and much cheaper
                                # than scaling the (TQ, Sk) scores tile.


def sdpa_kernel(q_ref, k_ref, v_ref, mask_ref, ctx_ref, attn_ref):
    # q_ref: (TQ, d_k) bf16   k_ref: (Sk, d_k) bf16   v_ref: (Sk, d_v) bf16
    # mask_ref: (TQ, Sk) int8 (nonzero == masked)
    # ctx_ref: (TQ, d_v) f32  attn_ref: (TQ, Sk) f32-or-bf16
    q = q_ref[...] * _SCALE                                   # bf16, exact scale fold

    # Q @ K^T without an explicit transpose: contract the native last dims on the MXU.
    scores = jax.lax.dot_general(
        q, k_ref[...],
        dimension_numbers=(((1,), (1,)), ((), ())),
        preferred_element_type=jnp.float32)                   # (TQ, Sk) f32

    # masked_fill_(attn_mask, -1e9): replace (not add), so fully-masked rows degrade to
    # uniform weights exactly like the torch reference.
    scores = jnp.where(mask_ref[...] != 0, jnp.float32(-1e9), scores)

    # Numerically stable softmax along keys. Keep (TQ, Sk) elementwise work minimal:
    # one exp per element (EUP) and one multiply; the reciprocal is exact but only (TQ, 1).
    m = jnp.max(scores, axis=-1, keepdims=True)
    e = jnp.exp(scores - m)
    denom = jnp.sum(e, axis=-1, keepdims=True)
    weights = e * (1.0 / denom)                               # rows sum to ~1 (torch parity)

    attn_ref[...] = weights.astype(attn_ref.dtype)

    ctx_ref[...] = jnp.dot(weights.astype(jnp.bfloat16), v_ref[...],
                           preferred_element_type=jnp.float32).astype(ctx_ref.dtype)


def _pick_q_tile(sq: int) -> int:
    # Full extent for small Sq (always a legal block), otherwise a 256-row tile (multiple
    # of 8) so the per-step footprint stays well under v7x's 64 MiB VMEM even at large Sk.
    return sq if sq <= 256 else 256


@functools.partial(jax.jit, static_argnames=("weights_dtype",))
def scaled_dot_product_attention(Q, K, V, attn_mask, *, weights_dtype=jnp.float32):
    """Pallas TPU equivalent of ScaledDotProductAttention.forward.

    Q: (B, H, Sq, d_k), K: (B, H, Sk, d_k), V: (B, H, Sk, d_v)
    attn_mask: (B, H, Sq, Sk), nonzero/True == masked (torch masked_fill_ convention)
    returns (context (B, H, Sq, d_v) f32, weights (B, H, Sq, Sk) `weights_dtype`)
    """
    B, H, Sq, dk = Q.shape
    Sk = K.shape[2]
    dv = V.shape[3]
    TQ = _pick_q_tile(Sq)

    # bf16 matmul operands at the kernel boundary (half the Q/K/V DMA bytes, f32 MXU
    # accumulation); mixed-precision callers should pass bf16 directly.
    q_bf = Q.astype(jnp.bfloat16)
    k_bf = K.astype(jnp.bfloat16)
    v_bf = V.astype(jnp.bfloat16)
    # int8 mask: 4x less HBM read traffic than an f32 mask.
    mask_i8 = attn_mask.astype(jnp.int8)

    grid = (B, H, pl.cdiv(Sq, TQ))
    # Leading batch/head dims are squeezed (None) so kernel refs are plain 2-D tiles.
    in_specs = [
        pl.BlockSpec((None, None, TQ, dk), lambda b, h, qi: (b, h, qi, 0)),
        pl.BlockSpec((None, None, Sk, dk), lambda b, h, qi: (b, h, 0, 0)),
        pl.BlockSpec((None, None, Sk, dv), lambda b, h, qi: (b, h, 0, 0)),
        pl.BlockSpec((None, None, TQ, Sk), lambda b, h, qi: (b, h, qi, 0)),
    ]
    out_specs = (
        pl.BlockSpec((None, None, TQ, dv), lambda b, h, qi: (b, h, qi, 0)),
        pl.BlockSpec((None, None, TQ, Sk), lambda b, h, qi: (b, h, qi, 0)),
    )

    ctx, weights = pl.pallas_call(
        sdpa_kernel,
        out_shape=(jax.ShapeDtypeStruct((B, H, Sq, dv), jnp.float32),
                   jax.ShapeDtypeStruct((B, H, Sq, Sk), weights_dtype)),
        grid_spec=pltpu.PrefetchScalarGridSpec(
            num_scalar_prefetch=0, grid=grid,
            in_specs=in_specs, out_specs=out_specs),
        compiler_params=pltpu.CompilerParams(
            # Every axis is independent work -> megacore / second-TC sharding.
            dimension_semantics=("parallel", "parallel", "parallel"),
            # Per-step footprint is O(TQ*Sk + Sk*d); 48 MiB is safe on v5e/v6e and stays
            # within v7x's 64 MiB physical VMEM.
            vmem_limit_bytes=48 * 1024 * 1024),
    )(q_bf, k_bf, v_bf, mask_i8)
    return ctx, weights


def _reference(Q, K, V, attn_mask):
    scores = jnp.einsum("bhqd,bhkd->bhqk", Q, K) / math.sqrt(d_k)
    scores = jnp.where(attn_mask, jnp.float32(-1e9), scores)
    w = jax.nn.softmax(scores, axis=-1)
    return jnp.einsum("bhqk,bhkd->bhqd", w, V), w


if __name__ == "__main__":
    key = jax.random.PRNGKey(0)
    kq, kk, kv = jax.random.split(key, 3)

    B, H, Sq, Sk = 2, n_heads, 8, 16
    Q = jax.random.normal(kq, (B, H, Sq, d_k), jnp.float32)
    K = jax.random.normal(kk, (B, H, Sk, d_k), jnp.float32)
    V = jax.random.normal(kv, (B, H, Sk, d_v), jnp.float32)

    # padding-style mask (True == masked): hide the last 4 key positions for every query
    pad = jnp.arange(Sk) >= (Sk - 4)
    attn_mask = jnp.broadcast_to(pad[None, None, None, :], (B, H, Sq, Sk))

    ctx, weights = scaled_dot_product_attention(Q, K, V, attn_mask)
    jax.block_until_ready((ctx, weights))

    assert ctx.shape == (B, H, Sq, d_v)
    assert weights.shape == (B, H, Sq, Sk)
    assert weights.dtype == jnp.float32

    ctx_ref, w_ref = _reference(Q, K, V, attn_mask)
    # Loose tolerances: matmuls run with bf16 operands (f32 accumulation).
    assert jnp.allclose(weights, w_ref, atol=5e-2, rtol=5e-2)
    assert jnp.allclose(ctx, ctx_ref, atol=1e-1, rtol=1e-1)
    assert bool(jnp.all(weights[..., -4:] < 1e-6))          # masked keys get ~zero weight
    assert jnp.allclose(weights.sum(-1), 1.0, atol=1e-5)    # exact-recip softmax rows

    # Low-HBM-traffic variant: bf16 attention weights (halves the dominant output stream).
    ctx2, weights_bf16 = scaled_dot_product_attention(Q, K, V, attn_mask,
                                                      weights_dtype=jnp.bfloat16)
    jax.block_until_ready((ctx2, weights_bf16))
    assert weights_bf16.dtype == jnp.bfloat16
    assert jnp.allclose(weights_bf16.astype(jnp.float32), w_ref, atol=1e-1, rtol=1e-1)
    assert jnp.allclose(ctx2, ctx_ref, atol=1e-1, rtol=1e-1)

    print("KERNEL_OK")
</pallas_src>

<mosaic_0001>
module attributes {stable_mosaic.version = 11 : i64} {
  func.func @sdpa_kernel(%arg0: i32, %arg1: i32, %arg2: i32, %arg3: memref<1x1x8x64xbf16, #tpu.memory_space<vmem>>, %arg4: memref<1x1x16x64xbf16, #tpu.memory_space<vmem>>, %arg5: memref<1x1x16x64xbf16, #tpu.memory_space<vmem>>, %arg6: memref<1x1x8x16xi8, #tpu.memory_space<vmem>>, %arg7: memref<1x1x8x64xf32, #tpu.memory_space<vmem>>, %arg8: memref<1x1x8x16xf32, #tpu.memory_space<vmem>>) attributes {dimension_semantics = [#tpu.dimension_semantics<parallel>, #tpu.dimension_semantics<parallel>, #tpu.dimension_semantics<parallel>], iteration_bounds = array<i64: 2, 8, 1>, scalar_prefetch = 0 : i64, scratch_operands = 0 : i64, tpu.core_type = #tpu.core_type<tc>, window_params = [{transform_indices = @transform_0, window_bounds = array<i64: 1, 1, 8, 64>}, {transform_indices = @transform_1, window_bounds = array<i64: 1, 1, 16, 64>}, {transform_indices = @transform_2, window_bounds = array<i64: 1, 1, 16, 64>}, {transform_indices = @transform_3, window_bounds = array<i64: 1, 1, 8, 16>}, {transform_indices = @transform_4, window_bounds = array<i64: 1, 1, 8, 64>}, {transform_indices = @transform_5, window_bounds = array<i64: 1, 1, 8, 16>}]} {
    %c0 = arith.constant 0 : index
    %c0_0 = arith.constant 0 : index
    %c0_1 = arith.constant 0 : index
    %c0_2 = arith.constant 0 : index
    %0 = vector.load %arg3[%c0, %c0_0, %c0_1, %c0_2] : memref<1x1x8x64xbf16, #tpu.memory_space<vmem>>, vector<1x1x8x64xbf16>
    %1 = vector.shape_cast %0 : vector<1x1x8x64xbf16> to vector<8x64xbf16>
    %cst = arith.constant 1.250000e-01 : bf16
    %2 = vector.broadcast %cst : bf16 to vector<8x64xbf16>
    %3 = arith.mulf %1, %2 : vector<8x64xbf16>
    %c0_3 = arith.constant 0 : index
    %c0_4 = arith.constant 0 : index
    %c0_5 = arith.constant 0 : index
    %c0_6 = arith.constant 0 : index
    %4 = vector.load %arg4[%c0_3, %c0_4, %c0_5, %c0_6] : memref<1x1x16x64xbf16, #tpu.memory_space<vmem>>, vector<1x1x16x64xbf16>
    %5 = vector.shape_cast %4 : vector<1x1x16x64xbf16> to vector<16x64xbf16>
    %cst_7 = arith.constant dense<0.000000e+00> : vector<8x16xf32>
    %6 = tpu.matmul %3, %5, %cst_7 {dimension_numbers = #tpu.dot_dimension_numbers<[1], [1], [0], [0], [0, 0, 1, 0], [], []>} : vector<8x64xbf16>, vector<16x64xbf16>, vector<8x16xf32> -> vector<8x16xf32>
    %c0_8 = arith.constant 0 : index
    %c0_9 = arith.constant 0 : index
    %c0_10 = arith.constant 0 : index
    %c0_11 = arith.constant 0 : index
    %7 = vector.load %arg6[%c0_8, %c0_9, %c0_10, %c0_11] : memref<1x1x8x16xi8, #tpu.memory_space<vmem>>, vector<1x1x8x16xi8>
    %8 = vector.shape_cast %7 : vector<1x1x8x16xi8> to vector<8x16xi8>
    %c0_i8 = arith.constant 0 : i8
    %9 = vector.broadcast %c0_i8 : i8 to vector<8x16xi8>
    %10 = arith.cmpi ne, %8, %9 : vector<8x16xi8>
    %cst_12 = arith.constant -1.000000e+09 : f32
    %11 = vector.broadcast %cst_12 : f32 to vector<8x16xf32>
    %12 = arith.select %10, %11, %6 : vector<8x16xi1>, vector<8x16xf32>
    %cst_13 = arith.constant dense<0xFF800000> : vector<8xf32>
    %13 = vector.multi_reduction <maximumf>, %12, %cst_13 [1] : vector<8x16xf32> to vector<8xf32>
    %14 = vector.shape_cast %13 : vector<8xf32> to vector<8x1xf32>
    %15 = vector.broadcast %14 : vector<8x1xf32> to vector<8x16xf32>
    %16 = arith.subf %12, %15 : vector<8x16xf32>
    %17 = math.exp %16 : vector<8x16xf32>
    %cst_14 = arith.constant dense<0.000000e+00> : vector<8xf32>
    %18 = vector.multi_reduction <add>, %17, %cst_14 [1] : vector<8x16xf32> to vector<8xf32>
    %19 = vector.shape_cast %18 : vector<8xf32> to vector<8x1xf32>
    %cst_15 = arith.constant 1.000000e+00 : f32
    %20 = vector.broadcast %cst_15 : f32 to vector<8x1xf32>
    %21 = arith.divf %20, %19 : vector<8x1xf32>
    %22 = vector.broadcast %21 : vector<8x1xf32> to vector<8x16xf32>
    %23 = arith.mulf %17, %22 : vector<8x16xf32>
    %c0_16 = arith.constant 0 : index
    %c0_17 = arith.constant 0 : index
    %c0_18 = arith.constant 0 : index
    %c0_19 = arith.constant 0 : index
    %24 = vector.load %arg8[%c0_16, %c0_17, %c0_18, %c0_19] : memref<1x1x8x16xf32, #tpu.memory_space<vmem>>, vector<1x1x8x16xf32>
    %25 = vector.shape_cast %24 : vector<1x1x8x16xf32> to vector<8x16xf32>
    %26 = vector.shape_cast %23 : vector<8x16xf32> to vector<1x1x8x16xf32>
    tpu.vector_store %arg8[%c0_16, %c0_17, %c0_18, %c0_19], %26 {strides = array<i32>} : memref<1x1x8x16xf32, #tpu.memory_space<vmem>>, vector<1x1x8x16xf32>,
    %27 = arith.truncf %23 : vector<8x16xf32> to vector<8x16xbf16>
    %c0_20 = arith.constant 0 : index
    %c0_21 = arith.constant 0 : index
    %c0_22 = arith.constant 0 : index
    %c0_23 = arith.constant 0 : index
    %28 = vector.load %arg5[%c0_20, %c0_21, %c0_22, %c0_23] : memref<1x1x16x64xbf16, #tpu.memory_space<vmem>>, vector<1x1x16x64xbf16>
    %29 = vector.shape_cast %28 : vector<1x1x16x64xbf16> to vector<16x64xbf16>
    %cst_24 = arith.constant dense<0.000000e+00> : vector<8x64xf32>
    %30 = tpu.matmul %27, %29, %cst_24 {dimension_numbers = #tpu.dot_dimension_numbers<[1], [0], [0], [1], [0, 0, 1, 1], [], []>} : vector<8x16xbf16>, vector<16x64xbf16>, vector<8x64xf32> -> vector<8x64xf32>
    %c0_25 = arith.constant 0 : index
    %c0_26 = arith.constant 0 : index
    %c0_27 = arith.constant 0 : index
    %c0_28 = arith.constant 0 : index
    %31 = vector.load %arg7[%c0_25, %c0_26, %c0_27, %c0_28] : memref<1x1x8x64xf32, #tpu.memory_space<vmem>>, vector<1x1x8x64xf32>
    %32 = vector.shape_cast %31 : vector<1x1x8x64xf32> to vector<8x64xf32>
    %33 = vector.shape_cast %30 : vector<8x64xf32> to vector<1x1x8x64xf32>
    tpu.vector_store %arg7[%c0_25, %c0_26, %c0_27, %c0_28], %33 {strides = array<i32>} : memref<1x1x8x64xf32, #tpu.memory_space<vmem>>, vector<1x1x8x64xf32>,
    return
  }
  func.func @transform_0(%arg0: i32, %arg1: i32, %arg2: i32) -> (i32, i32, i32, i32) {
    %c0_i32 = arith.constant 0 : i32
    %c0_i32_0 = arith.constant 0 : i32
    return %arg0, %arg1, %arg2, %c0_i32 : i32, i32, i32, i32
  }
  func.func @transform_1(%arg0: i32, %arg1: i32, %arg2: i32) -> (i32, i32, i32, i32) {
    %c0_i32 = arith.constant 0 : i32
    %c0_i32_0 = arith.constant 0 : i32
    %c0_i32_1 = arith.constant 0 : i32
    return %arg0, %arg1, %c0_i32, %c0_i32_0 : i32, i32, i32, i32
  }
  func.func @transform_2(%arg0: i32, %arg1: i32, %arg2: i32) -> (i32, i32, i32, i32) {
    %c0_i32 = arith.constant 0 : i32
    %c0_i32_0 = arith.constant 0 : i32
    %c0_i32_1 = arith.constant 0 : i32
    return %arg0, %arg1, %c0_i32, %c0_i32_0 : i32, i32, i32, i32
  }
  func.func @transform_3(%arg0: i32, %arg1: i32, %arg2: i32) -> (i32, i32, i32, i32) {
    %c0_i32 = arith.constant 0 : i32
    %c0_i32_0 = arith.constant 0 : i32
    return %arg0, %arg1, %arg2, %c0_i32 : i32, i32, i32, i32
  }
  func.func @transform_4(%arg0: i32, %arg1: i32, %arg2: i32) -> (i32, i32, i32, i32) {
    %c0_i32 = arith.constant 0 : i32
    %c0_i32_0 = arith.constant 0 : i32
    return %arg0, %arg1, %arg2, %c0_i32 : i32, i32, i32, i32
  }
  func.func @transform_5(%arg0: i32, %arg1: i32, %arg2: i32) -> (i32, i32, i32, i32) {
    %c0_i32 = arith.constant 0 : i32
    %c0_i32_0 = arith.constant 0 : i32
    return %arg0, %arg1, %arg2, %c0_i32 : i32, i32, i32, i32
  }
}

</mosaic_0001>

<llo_original>
// kernel: scaled_dot_product_attention.1
$region0: #{scaled_dot_product_attention.1}
  #allocation0 [shape = 'u32[]', space=smem, size = 0x4, offset = 0x4, fixed_abs, tag = 'smem constant byte address 0x4 - core index']
  #allocation1 [shape = 'u32[144,128]{1,0:T(1,128)}', space=vmem, size = 0x12000, scoped, tag = 'internal scratch']
  %s0 = inlined_call_operand.vmem [shape: bf16[2,8,8,64], index: 0, kind: input, shape index: {}]
  %s1 = inlined_call_operand.vmem [shape: bf16[2,8,16,64], index: 1, kind: input, shape index: {}]
  %s2 = inlined_call_operand.vmem [shape: bf16[2,8,16,64], index: 2, kind: input, shape index: {}]
  %s3 = inlined_call_operand.vmem [shape: s8[2,8,8,16], index: 3, kind: input, shape index: {}]
  %s4 = inlined_call_operand.hbm [shape: f32[2,8,8,64], index: 4, kind: output, shape index: {0}]
  %s5 = inlined_call_operand.hbm [shape: f32[2,8,8,16], index: 5, kind: output, shape index: {1}]
  %6 = xla_tuple %s4, %s5
  %s7 = sld [smem:[#allocation0]]
  $region57: #{scaled_dot_product_attention.1} parent=0
    _
  %s9 = ssub.s32 1, %s7
  %s10 = scalar_select 0, %s9, %s7
  $region1: #{scaled_dot_product_attention.1} parent=0
    #allocation2 [shape = 'u8[8192]{0}', space=vmem, size = 0x2000, scoped, tag = 'output window, operand 0']
    #allocation3 [shape = 's32[2]{0}', space=sflag, size = 0x8, scoped, tag = 'scoped memory for scaled_dot_product_attention.1']
    #allocation4 [shape = 'u8[8192]{0}', space=vmem, size = 0x2000, scoped, tag = 'output window, operand 1']
    #allocation5 [shape = 's32[2]{0}', space=sflag, size = 0x8, scoped, tag = 'scoped memory for scaled_dot_product_attention.1']
    %11 = vsyncpa [#allocation3], 0
    %s12 = scalar_lea.sflag [#allocation3], 1
    %13 = vsyncpa %s12, 0
    %14 = vsyncpa [#allocation5], 0
    %s15 = scalar_lea.sflag [#allocation5], 1
    %16 = vsyncpa %s15, 0
    loop: start=0, step=1, limit=18
    $region2: #{scaled_dot_product_attention.1} parent=1 // loop_pre_header
      _
    $region3: #{scaled_dot_product_attention.1} parent=1 // loop_header
      %s18 = sphi 0, %s22
      %p19 = scmp.ge.s32.totalorder %s18, 18
      %s25 = sphi 0, %s44
      %s26 = sphi 0, %s40
      %s27 = sphi 0, %s36
      %s28 = sphi 0, %s25
      %s29 = sphi 0, %s26
      %s30 = sphi 0, %s27
      %s31 = sphi 0, %s28
      %s32 = sphi 0, %s29
      %s33 = sphi 0, %s30
      %s51 = sphi 0, %s53
      %s54 = sphi 0, %s51
      %s55 = sphi 0, %s54
      %s71 = sphi 0, %s55
      %s79 = sphi 0, %s81
      %s82 = sphi 0, %s79
      %s83 = sphi 0, %s82
      %s99 = sphi 0, %s83
      %s107 = sphi 0, %s109
      %s110 = sphi 0, %s107
      %s111 = sphi 0, %s110
      %s127 = sphi 0, %s111
      %s137 = sphi 0, %s139
      %s140 = sphi 0, %s137
      %s141 = sphi 0, %s140
      %s157 = sphi 0, %s141
      %s167 = sphi 0, %s169
      %s170 = sphi 0, %s167
      %s171 = sphi 0, %s170
      %s187 = sphi 0, %s171
      %s197 = sphi 0, %s199
      %s200 = sphi 0, %s197
      %s201 = sphi 0, %s200
      %s217 = sphi 0, %s201
    $region4: #{scaled_dot_product_attention.1} parent=1 // loop_header_branch
      %21 = sbr.rel (%p19) target = $region8
    $region5: #{scaled_dot_product_attention.1} parent=1 // loop_body
      %s23 = ssub.s32 %s18, 1
      %s24 = ssub.s32 %s18, 2
      %s34 = sadd.s32 1, %s27
      %p35 = scmp.ge.s32.totalorder %s34, 1
      %s36 = scalar_select %p35, 0, %s34
      %s37 = sadd.s32 1, %s26
      %s38 = scalar_select %p35, %s37, %s26
      %p39 = scmp.ge.s32.totalorder %s38, 8
      %s40 = scalar_select %p39, 0, %s38
      %s41 = sadd.s32 1, %s25
      %s42 = scalar_select %p39, %s41, %s25
      %p43 = scmp.ge.s32.totalorder %s42, 2
      %s44 = scalar_select %p43, 0, %s42
      %s45 = ssub.s32 %s25, %s44
      %s46 = ssub.s32 %s26, %s40
      %s47 = sor.u32 %s45, %s46
      %s48 = ssub.s32 %s27, %s36
      %s49 = sor.u32 %s47, %s48
      %p50 = scmp.eq.s32.totalorder %s49, 0
      %s52 = sadd.s32 %s51, 1
      %s53 = scalar_select %p50, %s51, %s52
      %p56 = pneg %p50
      %p57 = scmp.eq.s32.totalorder %s18, 15
      %p58 = por %p56, %p57
      %p59 = scmp.ne.s32.totalorder %s51, %s54
      %p60 = scmp.eq.s32.totalorder %s18, 0
      %p61 = por %p59, %p60
      %p62 = scmp.ne.s32.totalorder %s51, %s54
      %p63 = scmp.eq.s32.totalorder %s23, 15
      %p64 = por %p62, %p63
      %p65 = scmp.ne.s32.totalorder %s54, %s55
      %p66 = scmp.eq.s32.totalorder %s23, 0
      %p67 = por %p65, %p66
      %p68 = scmp.ne.s32.totalorder %s54, %s55
      %p69 = scmp.eq.s32.totalorder %s24, 15
      %p70 = por %p68, %p69
      %p72 = scmp.ne.s32.totalorder %s55, %s71
      %p73 = scmp.eq.s32.totalorder %s24, 0
      %p74 = por %p72, %p73
      %s75 = ssub.s32 %s25, %s44
      %s76 = ssub.s32 %s26, %s40
      %s77 = sor.u32 %s75, %s76
      %p78 = scmp.eq.s32.totalorder %s77, 0
      %s80 = sadd.s32 %s79, 1
      %s81 = scalar_select %p78, %s79, %s80
      %p84 = pneg %p78
      %p85 = scmp.eq.s32.totalorder %s18, 15
      %p86 = por %p84, %p85
      %p87 = scmp.ne.s32.totalorder %s79, %s82
      %p88 = scmp.eq.s32.totalorder %s18, 0
      %p89 = por %p87, %p88
      %p90 = scmp.ne.s32.totalorder %s79, %s82
      %p91 = scmp.eq.s32.totalorder %s23, 15
      %p92 = por %p90, %p91
      %p93 = scmp.ne.s32.totalorder %s82, %s83
      %p94 = scmp.eq.s32.totalorder %s23, 0
      %p95 = por %p93, %p94
      %p96 = scmp.ne.s32.totalorder %s82, %s83
      %p97 = scmp.eq.s32.totalorder %s24, 15
      %p98 = por %p96, %p97
      %p100 = scmp.ne.s32.totalorder %s83, %s99
      %p101 = scmp.eq.s32.totalorder %s24, 0
      %p102 = por %p100, %p101
      %s103 = ssub.s32 %s25, %s44
      %s104 = ssub.s32 %s26, %s40
      %s105 = sor.u32 %s103, %s104
      %p106 = scmp.eq.s32.totalorder %s105, 0
      %s108 = sadd.s32 %s107, 1
      %s109 = scalar_select %p106, %s107, %s108
      %p112 = pneg %p106
      %p113 = scmp.eq.s32.totalorder %s18, 15
      %p114 = por %p112, %p113
      %p115 = scmp.ne.s32.totalorder %s107, %s110
      %p116 = scmp.eq.s32.totalorder %s18, 0
      %p117 = por %p115, %p116
      %p118 = scmp.ne.s32.totalorder %s107, %s110
      %p119 = scmp.eq.s32.totalorder %s23, 15
      %p120 = por %p118, %p119
      %p121 = scmp.ne.s32.totalorder %s110, %s111
      %p122 = scmp.eq.s32.totalorder %s23, 0
      %p123 = por %p121, %p122
      %p124 = scmp.ne.s32.totalorder %s110, %s111
      %p125 = scmp.eq.s32.totalorder %s24, 15
      %p126 = por %p124, %p125
      %p128 = scmp.ne.s32.totalorder %s111, %s127
      %p129 = scmp.eq.s32.totalorder %s24, 0
      %p130 = por %p128, %p129
      %s131 = ssub.s32 %s25, %s44
      %s132 = ssub.s32 %s26, %s40
      %s133 = sor.u32 %s131, %s132
      %s134 = ssub.s32 %s27, %s36
      %s135 = sor.u32 %s133, %s134
      %p136 = scmp.eq.s32.totalorder %s135, 0
      %s138 = sadd.s32 %s137, 1
      %s139 = scalar_select %p136, %s137, %s138
      %p142 = pneg %p136
      %p143 = scmp.eq.s32.totalorder %s18, 15
      %p144 = por %p142, %p143
      %p145 = scmp.ne.s32.totalorder %s137, %s140
      %p146 = scmp.eq.s32.totalorder %s18, 0
      %p147 = por %p145, %p146
      %p148 = scmp.ne.s32.totalorder %s137, %s140
      %p149 = scmp.eq.s32.totalorder %s23, 15
      %p150 = por %p148, %p149
      %p151 = scmp.ne.s32.totalorder %s140, %s141
      %p152 = scmp.eq.s32.totalorder %s23, 0
      %p153 = por %p151, %p152
      %p154 = scmp.ne.s32.totalorder %s140, %s141
      %p155 = scmp.eq.s32.totalorder %s24, 15
      %p156 = por %p154, %p155
      %p158 = scmp.ne.s32.totalorder %s141, %s157
      %p159 = scmp.eq.s32.totalorder %s24, 0
      %p160 = por %p158, %p159
      %s161 = ssub.s32 %s25, %s44
      %s162 = ssub.s32 %s26, %s40
      %s163 = sor.u32 %s161, %s162
      %s164 = ssub.s32 %s27, %s36
      %s165 = sor.u32 %s163, %s164
      %p166 = scmp.eq.s32.totalorder %s165, 0
      %s168 = sadd.s32 %s167, 1
      %s169 = scalar_select %p166, %s167, %s168
      %p172 = pneg %p166
      %p173 = scmp.eq.s32.totalorder %s18, 15
      %p174 = por %p172, %p173
      %p175 = scmp.ne.s32.totalorder %s167, %s170
      %p176 = scmp.eq.s32.totalorder %s18, 0
      %p177 = por %p175, %p176
      %p178 = scmp.ne.s32.totalorder %s167, %s170
      %p179 = scmp.eq.s32.totalorder %s23, 15
      %p180 = por %p178, %p179
      %p181 = scmp.ne.s32.totalorder %s170, %s171
      %p182 = scmp.eq.s32.totalorder %s23, 0
      %p183 = por %p181, %p182
      %p184 = scmp.ne.s32.totalorder %s170, %s171
      %p185 = scmp.eq.s32.totalorder %s24, 15
      %p186 = por %p184, %p185
      %p188 = scmp.ne.s32.totalorder %s171, %s187
      %p189 = scmp.eq.s32.totalorder %s24, 0
      %p190 = por %p188, %p189
      %s191 = ssub.s32 %s25, %s44
      %s192 = ssub.s32 %s26, %s40
      %s193 = sor.u32 %s191, %s192
      %s194 = ssub.s32 %s27, %s36
      %s195 = sor.u32 %s193, %s194
      %p196 = scmp.eq.s32.totalorder %s195, 0
      %s198 = sadd.s32 %s197, 1
      %s199 = scalar_select %p196, %s197, %s198
      %p202 = pneg %p196
      %p203 = scmp.eq.s32.totalorder %s18, 15
      %p204 = por %p202, %p203
      %p205 = scmp.ne.s32.totalorder %s197, %s200
      %p206 = scmp.eq.s32.totalorder %s18, 0
      %p207 = por %p205, %p206
      %p208 = scmp.ne.s32.totalorder %s197, %s200
      %p209 = scmp.eq.s32.totalorder %s23, 15
      %p210 = por %p208, %p209
      %p211 = scmp.ne.s32.totalorder %s200, %s201
      %p212 = scmp.eq.s32.totalorder %s23, 0
      %p213 = por %p211, %p212
      %p214 = scmp.ne.s32.totalorder %s200, %s201
      %p215 = scmp.eq.s32.totalorder %s24, 15
      %p216 = por %p214, %p215
      %p218 = scmp.ne.s32.totalorder %s201, %s217
      %p219 = scmp.eq.s32.totalorder %s24, 0
      %p220 = por %p218, %p219
      %p221 = scmp.le.s32.totalorder 1, %s18
      %p222 = scmp.lt.s32.totalorder %s18, 17
      %p223 = pnand %p221, %p222
      %p224 = pneg %p223
      // Predicated region
      $region9: #{scaled_dot_product_attention.1} parent=5 // pred_check
        _
      $region10: #{scaled_dot_product_attention.1} parent=5 // pred_check_branch
        %226 = sbr.rel (%p223) target = $region12
      $region11: #{scaled_dot_product_attention.1} parent=5 // pred_region
        %s227 = ssub.s32 %s18, 1
      $region12: #{scaled_dot_product_attention.1} parent=5 // pred_fallthru
        _
      %p228 = scmp.lt.s32.totalorder %s18, 16
      // Predicated region
      $region13: #{scaled_dot_product_attention.1} parent=5 // pred_check
        %p229 = pneg %p228
      $region14: #{scaled_dot_product_attention.1} parent=5 // pred_check_branch
        %231 = sbr.rel (%p229) target = $region16
      $region15: #{scaled_dot_product_attention.1} parent=5 // pred_region
        // Predicated region
        $region17: #{scaled_dot_product_attention.1} parent=15 // pred_check
          %p232 = pneg %p61
        $region18: #{scaled_dot_product_attention.1} parent=15 // pred_check_branch
          %234 = sbr.rel (%p232) target = $region20
        $region19: #{scaled_dot_product_attention.1} parent=15 // pred_region
          %p235 = scmp.lt.s32.totalorder %s25, 1
          %s236 = scalar_select %p235, %s25, 1
          %p237 = scmp.lt.s32.totalorder %s26, 7
          %s238 = scalar_select %p237, %s26, 7
          %p239 = scmp.lt.s32.totalorder %s27, 0
          %s240 = scalar_select %p239, %s27, 0
          %s241 = sadd.s32 %s240, %s238
          %s242 = smul.addr %s236, 8
          %s243 = sadd.s32 %s241, %s242
          %s244 = smul.addr %s243, 4
          %s245 = scalar_lea.vmem %s0, %s244
        $region20: #{scaled_dot_product_attention.1} parent=15 // pred_fallthru
          _
        // Predicated region
        $region21: #{scaled_dot_product_attention.1} parent=15 // pred_check
          %p246 = pneg %p89
        $region22: #{scaled_dot_product_attention.1} parent=15 // pred_check_branch
          %248 = sbr.rel (%p246) target = $region24
        $region23: #{scaled_dot_product_attention.1} parent=15 // pred_region
          %p249 = scmp.lt.s32.totalorder %s25, 1
          %s250 = scalar_select %p249, %s25, 1
          %p251 = scmp.lt.s32.totalorder %s26, 7
          %s252 = scalar_select %p251, %s26, 7
          %s253 = smul.addr %s252, 2
          %s254 = smul.addr %s250, 16
          %s255 = sadd.s32 %s253, %s254
          %s256 = smul.addr %s255, 4
          %s257 = scalar_lea.vmem %s1, %s256
        $region24: #{scaled_dot_product_attention.1} parent=15 // pred_fallthru
          _
        // Predicated region
        $region25: #{scaled_dot_product_attention.1} parent=15 // pred_check
          %p258 = pneg %p117
        $region26: #{scaled_dot_product_attention.1} parent=15 // pred_check_branch
          %260 = sbr.rel (%p258) target = $region28
        $region27: #{scaled_dot_product_attention.1} parent=15 // pred_region
          %p261 = scmp.lt.s32.totalorder %s25, 1
          %s262 = scalar_select %p261, %s25, 1
          %p263 = scmp.lt.s32.totalorder %s26, 7
          %s264 = scalar_select %p263, %s26, 7
          %s265 = smul.addr %s264, 2
          %s266 = smul.addr %s262, 16
          %s267 = sadd.s32 %s265, %s266
          %s268 = smul.addr %s267, 4
          %s269 = scalar_lea.vmem %s2, %s268
        $region28: #{scaled_dot_product_attention.1} parent=15 // pred_fallthru
          _
        // Predicated region
        $region29: #{scaled_dot_product_attention.1} parent=15 // pred_check
          %p270 = pneg %p147
        $region30: #{scaled_dot_product_attention.1} parent=15 // pred_check_branch
          %272 = sbr.rel (%p270) target = $region32
        $region31: #{scaled_dot_product_attention.1} parent=15 // pred_region
          %p273 = scmp.lt.s32.totalorder %s25, 1
          %s274 = scalar_select %p273, %s25, 1
          %p275 = scmp.lt.s32.totalorder %s26, 7
          %s276 = scalar_select %p275, %s26, 7
          %p277 = scmp.lt.s32.totalorder %s27, 0
          %s278 = scalar_select %p277, %s27, 0
          %s279 = sadd.s32 %s278, %s276
          %s280 = smul.addr %s274, 8
          %s281 = sadd.s32 %s279, %s280
          %s282 = smul.addr %s281, 2
          %s283 = scalar_lea.vmem %s3, %s282
        $region32: #{scaled_dot_product_attention.1} parent=15 // pred_fallthru
          _
      $region16: #{scaled_dot_product_attention.1} parent=5 // pred_fallthru
        _
      %p284 = scmp.le.s32.totalorder 1, %s18
      %p285 = scmp.lt.s32.totalorder %s18, 17
      %p286 = pnand %p284, %p285
      %p287 = pneg %p286
      // Predicated region
      $region33: #{scaled_dot_product_attention.1} parent=5 // pred_check
        _
      $region34: #{scaled_dot_product_attention.1} parent=5 // pred_check_branch
        %289 = sbr.rel (%p286) target = $region36
      $region35: #{scaled_dot_product_attention.1} parent=5 // pred_region
        %s290 = ssub.s32 %s18, 1
        %p291 = scmp.lt.s32.totalorder %s28, 1
        %s292 = scalar_select %p291, %s28, 1
        %p293 = scmp.lt.s32.totalorder %s29, 7
        %s294 = scalar_select %p293, %s29, 7
        %p295 = scmp.lt.s32.totalorder %s30, 0
        %s296 = scalar_select %p295, %s30, 0
        %s297 = sadd.s32 %s296, %s294
        %s298 = smul.addr %s292, 8
        %s299 = sadd.s32 %s297, %s298
        %s300 = smul.addr %s299, 4
        %s301 = scalar_lea.vmem %s0, %s300
        %p302 = pneg %p67
        %p303 = pneg %p64
        %p304 = scmp.lt.s32.totalorder %s28, 1
        %s305 = scalar_select %p304, %s28, 1
        %p306 = scmp.lt.s32.totalorder %s29, 7
        %s307 = scalar_select %p306, %s29, 7
        %s308 = smul.addr %s307, 2
        %s309 = smul.addr %s305, 16
        %s310 = sadd.s32 %s308, %s309
        %s311 = smul.addr %s310, 4
        %s312 = scalar_lea.vmem %s1, %s311
        %p313 = pneg %p95
        %p314 = pneg %p92
        %p315 = scmp.lt.s32.totalorder %s28, 1
        %s316 = scalar_select %p315, %s28, 1
        %p317 = scmp.lt.s32.totalorder %s29, 7
        %s318 = scalar_select %p317, %s29, 7
        %s319 = smul.addr %s318, 2
        %s320 = smul.addr %s316, 16
        %s321 = sadd.s32 %s319, %s320
        %s322 = smul.addr %s321, 4
        %s323 = scalar_lea.vmem %s2, %s322
        %p324 = pneg %p123
        %p325 = pneg %p120
        %p326 = scmp.lt.s32.totalorder %s28, 1
        %s327 = scalar_select %p326, %s28, 1
        %p328 = scmp.lt.s32.totalorder %s29, 7
        %s329 = scalar_select %p328, %s29, 7
        %p330 = scmp.lt.s32.totalorder %s30, 0
        %s331 = scalar_select %p330, %s30, 0
        %s332 = sadd.s32 %s331, %s329
        %s333 = smul.addr %s327, 8
        %s334 = sadd.s32 %s332, %s333
        %s335 = smul.addr %s334, 2
        %s336 = scalar_lea.vmem %s3, %s335
        %p337 = pneg %p153
        %p338 = pneg %p150
        %p339 = pneg %p183
        %p340 = pneg %p180
        %s341 = sand.u32 %s170, 1
        %s342 = scalar_lea.sflag [#allocation3], %s341
        %s343 = sand.u32 %s170, 1
        %s344 = smul.addr %s343, 8
        %s345 = scalar_lea.vmem [#allocation2], %s344
        %p346 = pneg %p213
        %p347 = pneg %p210
        %s348 = sand.u32 %s200, 1
        %s349 = scalar_lea.sflag [#allocation5], %s348
        %s350 = sand.u32 %s200, 1
        %s351 = smul.addr %s350, 8
        %s352 = scalar_lea.vmem [#allocation4], %s351
        %p353 = scmp.lt.s32.totalorder %s28, 1
        %s354 = scalar_select %p353, %s28, 1
        %p355 = scmp.lt.s32.totalorder %s29, 7
        %s356 = scalar_select %p355, %s29, 7
        %p357 = scmp.lt.s32.totalorder %s30, 0
        %s358 = scalar_select %p357, %s30, 0
        %s359 = sadd.s32 %s358, %s356
        %s360 = smul.addr %s354, 8
        %s361 = sadd.s32 %s359, %s360
        %s362 = smul.addr %s361, 4
        %s363 = scalar_lea.vmem %s0, %s362
        %p364 = scmp.lt.s32.totalorder %s28, 1
        %s365 = scalar_select %p364, %s28, 1
        %p366 = scmp.lt.s32.totalorder %s29, 7
        %s367 = scalar_select %p366, %s29, 7
        %s368 = smul.addr %s367, 2
        %s369 = smul.addr %s365, 16
        %s370 = sadd.s32 %s368, %s369
        %s371 = smul.addr %s370, 4
        %s372 = scalar_lea.vmem %s1, %s371
        %p373 = scmp.lt.s32.totalorder %s28, 1
        %s374 = scalar_select %p373, %s28, 1
        %p375 = scmp.lt.s32.totalorder %s29, 7
        %s376 = scalar_select %p375, %s29, 7
        %s377 = smul.addr %s376, 2
        %s378 = smul.addr %s374, 16
        %s379 = sadd.s32 %s377, %s378
        %s380 = smul.addr %s379, 4
        %s381 = scalar_lea.vmem %s2, %s380
        %p382 = scmp.lt.s32.totalorder %s28, 1
        %s383 = scalar_select %p382, %s28, 1
        %p384 = scmp.lt.s32.totalorder %s29, 7
        %s385 = scalar_select %p384, %s29, 7
        %p386 = scmp.lt.s32.totalorder %s30, 0
        %s387 = scalar_select %p386, %s30, 0
        %s388 = sadd.s32 %s387, %s385
        %s389 = smul.addr %s383, 8
        %s390 = sadd.s32 %s388, %s389
        %s391 = smul.addr %s390, 2
        %s392 = scalar_lea.vmem %s3, %s391
        %v397 = vld [vmem:[%s363] sm:$0xf]
        %v398 = vmul.bf16 %v397, 1040203264
        %v399 = vld [vmem:[%s372] sm:$0xf]
        %v400 = vld [vmem:[%s372 + $0x4] sm:$0xf]
        %v403 = vunpack.c.l.b16 %v399
        %v404 = vunpack.c.l.b16 %v400
        %v405 = vpack.c.b16 %v404, %v403
        %vm406 = vcmask 523264
        %v408 = vsel %vm406, %v398, 0
        %v411 = vsel %vm406, %v405, 0
        %413 = vmatprep.subr.bf16.mxu0 0
        %414 = vmatpush1.bf16.xpose.msra.mxu0 0
        %415 = vmatprep.subr.bf16.mxu0 0
        %416 = vmatpush1.bf16.xpose.msra.mxu0 0
        %417 = vmatprep.subr.bf16.mxu0 0
        %418 = vmatpush1.bf16.xpose.msra.mxu0 0
        %419 = vmatprep.subr.bf16.mxu0 0
        %420 = vmatpush1.bf16.xpose.msra.mxu0 0
        %421 = vmatprep.subr.bf16.mxu0 0
        %422 = vmatpush1.bf16.xpose.msra.mxu0 0
        %423 = vmatprep.subr.bf16.mxu0 0
        %424 = vmatpush1.bf16.xpose.msra.mxu0 0
        %425 = vmatprep.subr.bf16.mxu0 0
        %426 = vmatpush1.bf16.xpose.msra.mxu0 0
        %427 = vmatprep.subr.bf16.mxu0 0
        %428 = vmatpush1.bf16.xpose.msra.mxu0 %v411
        %429 = vmatprep.subr.bf16.mxu0 0
        %430 = vmatpush2.bf16.xpose.msra.mxu0 0
        %431 = vmatprep.subr.bf16.mxu0 0
        %432 = vmatpush2.bf16.xpose.msra.mxu0 0
        %433 = vmatprep.subr.bf16.mxu0 0
        %434 = vmatpush2.bf16.xpose.msra.mxu0 0
        %435 = vmatprep.subr.bf16.mxu0 0
        %436 = vmatpush2.bf16.xpose.msra.mxu0 0
        %437 = vmatprep.subr.bf16.mxu0 0
        %438 = vmatpush2.bf16.xpose.msra.mxu0 0
        %439 = vmatprep.subr.bf16.mxu0 0
        %440 = vmatpush2.bf16.xpose.msra.mxu0 0
        %441 = vmatprep.subr.bf16.mxu0 0
        %442 = vmatpush2.bf16.xpose.msra.mxu0 0
        %443 = vmatprep.subr.bf16.mxu0 0
        %444 = vmatpush2.bf16.xpose.msra.mxu0 0
        %445 = vmatprep.mubr.bf16.mxu0 0
        %446 = vmatmul.mubr.bf16.gmra.mxu0 %v408
        %v447 = vpop.f32.mrf.mxu0
        %v448 = vadd.f32 0.0, %v447
        %v449 = vpop.f32.mrf.mxu0
        %v450 = vpop.f32.mrf.mxu0
        %v451 = vpop.f32.mrf.mxu0
        %452 = vdwg.mxu0
        %v453 = vld [vmem:[%s392] sm:$0x3]
        %vm454 = vnez %v453
        %v455 = vsel %vm454, 16843009, 0
        %v456 = vunpack.c.0.s8 %v455
        %vm457 = vcmp.ne.s32.totalorder %v456, 0
        %v458 = vsel %vm457, -1e+09, %v448
        %vm459 = vcmask 130048
        %v460 = vsel %vm459, %v458, -inf
        %461 = vmax.xlane.f32.xlu0 %v460
        %v462 = vpop.xlane.xlu0 %461
        %v463 = vsub.f32 %v458, %v462
        %v464 = vmul.f32 %v463, 1.442695
        %v465 = vpow.pop %v464
        %v466 = vsel %vm459, %v465, 0.0
        %467 = vadd.xlane.f32.xlu0 %v466
        %v468 = vpop.xlane.xlu0 %467
        %v469 = vrcp.pop %v468
        %v470 = vmul.f32 1.0, %v469
        %v471 = vmul.f32 %v465, %v470
        %472 = vst.msk [vmem:[%s352] sm:$0xff] %vm459, %v471
        %v473 = vpack.c.bf16 %v471, %v471
        %v474 = vld [vmem:[%s381] sm:$0xf]
        %v475 = vld [vmem:[%s381 + $0x4] sm:$0xf]
        %v478 = vunpack.c.l.b16 %v474
        %v479 = vunpack.c.l.b16 %v475
        %v480 = vpack.c.b16 %v479, %v478
        %v483 = vsel %vm459, %v473, 0
        %485 = vmatprep.subr.bf16.mxu0 0
        %486 = vmatpush1.bf16.msra.mxu0 0
        %487 = vmatprep.subr.bf16.mxu0 0
        %488 = vmatpush1.bf16.msra.mxu0 0
        %489 = vmatprep.subr.bf16.mxu0 0
        %490 = vmatpush1.bf16.msra.mxu0 0
        %491 = vmatprep.subr.bf16.mxu0 0
        %492 = vmatpush1.bf16.msra.mxu0 0
        %493 = vmatprep.subr.bf16.mxu0 0
        %494 = vmatpush1.bf16.msra.mxu0 0
        %495 = vmatprep.subr.bf16.mxu0 0
        %496 = vmatpush1.bf16.msra.mxu0 0
        %497 = vmatprep.subr.bf16.mxu0 0
        %498 = vmatpush1.bf16.msra.mxu0 0
        %499 = vmatprep.subr.bf16.mxu0 0
        %500 = vmatpush1.bf16.msra.mxu0 %v480
        %501 = vmatprep.subr.bf16.mxu0 0
        %502 = vmatpush2.bf16.msra.mxu0 0
        %503 = vmatprep.subr.bf16.mxu0 0
        %504 = vmatpush2.bf16.msra.mxu0 0
        %505 = vmatprep.subr.bf16.mxu0 0
        %506 = vmatpush2.bf16.msra.mxu0 0
        %507 = vmatprep.subr.bf16.mxu0 0
        %508 = vmatpush2.bf16.msra.mxu0 0
        %509 = vmatprep.subr.bf16.mxu0 0
        %510 = vmatpush2.bf16.msra.mxu0 0
        %511 = vmatprep.subr.bf16.mxu0 0
        %512 = vmatpush2.bf16.msra.mxu0 0
        %513 = vmatprep.subr.bf16.mxu0 0
        %514 = vmatpush2.bf16.msra.mxu0 0
        %515 = vmatprep.subr.bf16.mxu0 0
        %516 = vmatpush2.bf16.msra.mxu0 0
        %517 = vmatprep.mubr.bf16.mxu0 0
        %518 = vmatmul.mubr.bf16.gmra.mxu0 %v483
        %v519 = vpop.f32.mrf.mxu0
        %v520 = vadd.f32 0.0, %v519
        %v521 = vpop.f32.mrf.mxu0
        %v522 = vpop.f32.mrf.mxu0
        %v523 = vpop.f32.mrf.mxu0
        %524 = vdwg.mxu0
        %525 = vst.msk [vmem:[%s345] sm:$0xff] %vm406, %v520
        %s526 = sand.u32 %s170, 1
        %s527 = scalar_lea.sflag [#allocation3], %s526
        %s528 = sand.u32 %s170, 1
        %s529 = smul.addr %s528, 8
        %s530 = scalar_lea.vmem [#allocation2], %s529
        %s531 = sand.u32 %s200, 1
        %s532 = scalar_lea.sflag [#allocation5], %s531
        %s533 = sand.u32 %s200, 1
        %s534 = smul.addr %s533, 8
        %s535 = scalar_lea.vmem [#allocation4], %s534
        // Predicated region
        $region37: #{scaled_dot_product_attention.1} parent=35 // pred_check
          %p536 = pneg %p180
        $region38: #{scaled_dot_product_attention.1} parent=35 // pred_check_branch
          %538 = sbr.rel (%p536) target = $region40
        $region39: #{scaled_dot_product_attention.1} parent=35 // pred_region
          %s540 = ssub.s32 128, 128
          %541 = vsyncadd %s527, %s540
          %s542 = sadd.s32 %s30, %s29
          %s543 = smul.addr %s28, 8
          %s544 = sadd.s32 %s542, %s543
          %s545 = smul.addr %s544, 128
          %s546 = scalar_lea.hbm %s4, %s545
          %s548 = sshll.u32 %s530, 4
          %s549 = int_to_ptr.vmem [resolvable:$true] %s548
          %551 = dma.vmem_to_hbm [thread:$0]  %s549, 128, %s546, %s527
        $region40: #{scaled_dot_product_attention.1} parent=35 // pred_fallthru
          _
        // Predicated region
        $region41: #{scaled_dot_product_attention.1} parent=35 // pred_check
          %p552 = pneg %p210
        $region42: #{scaled_dot_product_attention.1} parent=35 // pred_check_branch
          %554 = sbr.rel (%p552) target = $region44
        $region43: #{scaled_dot_product_attention.1} parent=35 // pred_region
          %s556 = ssub.s32 128, 128
          %557 = vsyncadd %s532, %s556
          %s558 = sadd.s32 %s30, %s29
          %s559 = smul.addr %s28, 8
          %s560 = sadd.s32 %s558, %s559
          %s561 = smul.addr %s560, 128
          %s562 = scalar_lea.hbm %s5, %s561
          %s564 = sshll.u32 %s535, 4
          %s565 = int_to_ptr.vmem [resolvable:$true] %s564
          %567 = dma.vmem_to_hbm [thread:$0]  %s565, 128, %s562, %s532
        $region44: #{scaled_dot_product_attention.1} parent=35 // pred_fallthru
          _
      $region36: #{scaled_dot_product_attention.1} parent=5 // pred_fallthru
        _
      %p568 = scmp.le.s32.totalorder 2, %s18
      // Predicated region
      $region45: #{scaled_dot_product_attention.1} parent=5 // pred_check
        %p569 = pneg %p568
      $region46: #{scaled_dot_product_attention.1} parent=5 // pred_check_branch
        %571 = sbr.rel (%p569) target = $region48
      $region47: #{scaled_dot_product_attention.1} parent=5 // pred_region
        %s572 = ssub.s32 %s18, 2
        // Predicated region
        $region49: #{scaled_dot_product_attention.1} parent=47 // pred_check
          %p573 = pneg %p186
        $region50: #{scaled_dot_product_attention.1} parent=47 // pred_check_branch
          %575 = sbr.rel (%p573) target = $region52
        $region51: #{scaled_dot_product_attention.1} parent=47 // pred_region
          %s576 = sand.u32 %s171, 1
          %s577 = scalar_lea.sflag [#allocation3], %s576
          %s578 = sand.u32 %s171, 1
          %s579 = smul.addr %s578, 8
          %s580 = scalar_lea.vmem [#allocation2], %s579
          %581 = dma.done %s577, 128
        $region52: #{scaled_dot_product_attention.1} parent=47 // pred_fallthru
          _
        // Predicated region
        $region53: #{scaled_dot_product_attention.1} parent=47 // pred_check
          %p582 = pneg %p216
        $region54: #{scaled_dot_product_attention.1} parent=47 // pred_check_branch
          %584 = sbr.rel (%p582) target = $region56
        $region55: #{scaled_dot_product_attention.1} parent=47 // pred_region
          %s585 = sand.u32 %s201, 1
          %s586 = scalar_lea.sflag [#allocation5], %s585
          %s587 = sand.u32 %s201, 1
          %s588 = smul.addr %s587, 8
          %s589 = scalar_lea.vmem [#allocation4], %s588
          %590 = dma.done %s586, 128
        $region56: #{scaled_dot_product_attention.1} parent=47 // pred_fallthru
          _
      $region48: #{scaled_dot_product_attention.1} parent=5 // pred_fallthru
        _
    $region6: #{scaled_dot_product_attention.1} parent=1 // loop_footer
      %s22 = sadd.s32 1, %s18
    $region7: #{scaled_dot_product_attention.1} parent=1 // loop_footer_branch
      %17 = sbr.rel target = $region3
    $region8: #{scaled_dot_product_attention.1} parent=1 // loop_exit
      _
    %591 = vsyncpa [#allocation3], 1
    %s592 = scalar_lea.sflag [#allocation3], 1
    %593 = vsyncpa %s592, 1
    %594 = vsyncpa [#allocation5], 1
    %s595 = scalar_lea.sflag [#allocation5], 1
    %596 = vsyncpa %s595, 1

</llo_original>
